<compile_context>
chip_gen: v7x
topology: tpu7x:2x2x1
jax: 0.10.0
libtpu: 0.0.40
codegen_flags: <defaults>
</compile_context>

<pallas_src>
import functools

import jax
import jax.numpy as jnp
from jax.experimental import pallas as pl
from jax.experimental.pallas import tpu as pltpu


def _round_up(a, b):
    return (a + b - 1) // b * b


def _varpool_kernel(x_ref, p_ref, o_ref, *, kernel_size):
    # x_ref: (TILE_N, T) input rows, p_ref: (T, OUT_PAD) 0/1 banded pooling
    # matrix, o_ref: (TILE_N, OUT_PAD) lane-dense output slab.
    x = x_ref[...].astype(jnp.float32)          # keep all math in f32 (v5e-safe)
    p = p_ref[...]
    # Windowed sum and sum-of-squares via the MXU (lane-dense results).
    s = jnp.dot(x, p, preferred_element_type=jnp.float32)        # sum(w)
    q = jnp.dot(x * x, p, preferred_element_type=jnp.float32)    # sum(w*w)
    inv_k = 1.0 / float(kernel_size)
    # torch.Tensor.var default is unbiased (correction=1).
    # NOTE: kernel_size == 1 yields var = 0 here (-> log(1e-6)); PyTorch
    # returns NaN for a single-element unbiased variance.
    inv_km1 = 1.0 / float(kernel_size - 1) if kernel_size > 1 else 1.0
    var = (q - s * s * inv_k) * inv_km1
    # clip(1e-6, ...) also absorbs tiny negative round-off from the
    # E[x^2] - mean^2 formulation.
    o_ref[...] = jnp.log(jnp.clip(var, 1e-6, 1e6)).astype(o_ref.dtype)


def var_poold(x, kernel_size, stride):
    """x: (B, C, T) -> (B, C, out_len); matches VarPoold.forward."""
    B, C, T = x.shape
    N = B * C
    out_len = (T - kernel_size) // stride + 1
    out_pad = _round_up(out_len, 128)           # lane-dense output block

    # Row tile: multiple of 8 sublanes, sized so double-buffered input,
    # f32 temporaries and the output block stay well under the default
    # scoped VMEM limit on all of v5e / v6e / v7x.
    budget = 12 * 1024 * 1024
    per_row_bytes = 4 * (3 * T + 3 * out_pad)   # generous f32 estimate
    tile_n = max(8, min(512, (budget // max(per_row_bytes, 1)) // 8 * 8))
    tile_n = min(tile_n, _round_up(N, 8))
    n_pad = _round_up(N, tile_n)

    xf = x.reshape(N, T)
    if n_pad != N:
        xf = jnp.pad(xf, ((0, n_pad - N), (0, 0)))

    # Static 0/1 banded pooling matrix (T, out_pad): column i selects window
    # [i*stride, i*stride + kernel_size).  Padding columns are all-zero.
    t_idx = jnp.arange(T)[:, None]
    i_idx = jnp.arange(out_pad)[None, :]
    start = i_idx * stride
    pool = ((t_idx >= start)
            & (t_idx < start + kernel_size)
            & (i_idx < out_len)).astype(jnp.float32)

    out = pl.pallas_call(
        functools.partial(_varpool_kernel, kernel_size=kernel_size),
        out_shape=jax.ShapeDtypeStruct((n_pad, out_pad), x.dtype),
        grid=(n_pad // tile_n,),
        in_specs=[
            pl.BlockSpec((tile_n, T), lambda i: (i, 0)),
            pl.BlockSpec((T, out_pad), lambda i: (0, 0)),   # resident weights
        ],
        out_specs=pl.BlockSpec((tile_n, out_pad), lambda i: (i, 0)),
        compiler_params=pltpu.CompilerParams(
            dimension_semantics=("parallel",)),
    )(xf, pool)
    return out[:N, :out_len].reshape(B, C, out_len)


def _reference(x, kernel_size, stride):
    # Pure-JAX reference mirroring the PyTorch loop.
    T = x.shape[2]
    out_len = (T - kernel_size) // stride + 1
    outs = []
    for i in range(out_len):
        w = x[:, :, i * stride:i * stride + kernel_size]
        var = jnp.var(w, axis=-1, keepdims=True, ddof=1)
        outs.append(jnp.log(jnp.clip(var, 1e-6, 1e6)))
    return jnp.concatenate(outs, axis=-1)


if __name__ == "__main__":
    # VarPoold has no learned parameters; only kernel_size / stride hyperparams.
    kernel_size, stride = 4, 2
    B, C, T = 2, 4, 16

    key = jax.random.PRNGKey(0)
    x = jax.random.normal(key, (B, C, T), dtype=jnp.float32)

    out = var_poold(x, kernel_size, stride)
    out = jax.block_until_ready(out)

    ref = _reference(x, kernel_size, stride)
    assert out.shape == ref.shape, (out.shape, ref.shape)
    assert jnp.allclose(out, ref, atol=1e-4, rtol=1e-4), "mismatch vs reference"

    print("KERNEL_OK")
</pallas_src>

<mosaic_0001>
module attributes {stable_mosaic.version = 11 : i64} {
  func.func @_varpool_kernel(%arg0: i32, %arg1: memref<8x16xf32, #tpu.memory_space<vmem>>, %arg2: memref<16x128xf32, #tpu.memory_space<vmem>>, %arg3: memref<8x128xf32, #tpu.memory_space<vmem>>) attributes {dimension_semantics = [#tpu.dimension_semantics<parallel>], iteration_bounds = array<i64: 1>, scalar_prefetch = 0 : i64, scratch_operands = 0 : i64, tpu.core_type = #tpu.core_type<tc>, window_params = [{transform_indices = @transform_0, window_bounds = array<i64: 8, 16>}, {pipeline_mode = #tpu.pipeline_mode<synchronous>, transform_indices = @transform_1, window_bounds = array<i64: 16, 128>}, {transform_indices = @transform_2, window_bounds = array<i64: 8, 128>}]} {
    %c0 = arith.constant 0 : index
    %c0_0 = arith.constant 0 : index
    %0 = vector.load %arg1[%c0, %c0_0] : memref<8x16xf32, #tpu.memory_space<vmem>>, vector<8x16xf32>
    %c0_1 = arith.constant 0 : index
    %c0_2 = arith.constant 0 : index
    %1 = vector.load %arg2[%c0_1, %c0_2] : memref<16x128xf32, #tpu.memory_space<vmem>>, vector<16x128xf32>
    %cst = arith.constant dense<0.000000e+00> : vector<8x128xf32>
    %2 = tpu.matmul %0, %1, %cst {dimension_numbers = #tpu.dot_dimension_numbers<[1], [0], [0], [1], [0, 0, 1, 1], [], []>} : vector<8x16xf32>, vector<16x128xf32>, vector<8x128xf32> -> vector<8x128xf32>
    %3 = arith.mulf %0, %0 : vector<8x16xf32>
    %cst_3 = arith.constant dense<0.000000e+00> : vector<8x128xf32>
    %4 = tpu.matmul %3, %1, %cst_3 {dimension_numbers = #tpu.dot_dimension_numbers<[1], [0], [0], [1], [0, 0, 1, 1], [], []>} : vector<8x16xf32>, vector<16x128xf32>, vector<8x128xf32> -> vector<8x128xf32>
    %5 = arith.mulf %2, %2 : vector<8x128xf32>
    %cst_4 = arith.constant 2.500000e-01 : f32
    %6 = vector.broadcast %cst_4 : f32 to vector<8x128xf32>
    %7 = arith.mulf %5, %6 : vector<8x128xf32>
    %8 = arith.subf %4, %7 : vector<8x128xf32>
    %cst_5 = arith.constant 0.333333343 : f32
    %9 = vector.broadcast %cst_5 : f32 to vector<8x128xf32>
    %10 = arith.mulf %8, %9 : vector<8x128xf32>
    %cst_6 = arith.constant 9.99999997E-7 : f32
    %cst_7 = arith.constant 1.000000e+06 : f32
    %11 = vector.broadcast %cst_6 : f32 to vector<8x128xf32>
    %12 = arith.maximumf %11, %10 : vector<8x128xf32>
    %13 = vector.broadcast %cst_7 : f32 to vector<8x128xf32>
    %14 = arith.minimumf %13, %12 : vector<8x128xf32>
    %15 = math.log %14 : vector<8x128xf32>
    %c0_8 = arith.constant 0 : index
    %c0_9 = arith.constant 0 : index
    %16 = vector.load %arg3[%c0_8, %c0_9] : memref<8x128xf32, #tpu.memory_space<vmem>>, vector<8x128xf32>
    tpu.vector_store %arg3[%c0_8, %c0_9], %15 {strides = array<i32>} : memref<8x128xf32, #tpu.memory_space<vmem>>, vector<8x128xf32>,
    return
  }
  func.func @transform_0(%arg0: i32) -> (i32, i32) {
    %c0_i32 = arith.constant 0 : i32
    %c0_i32_0 = arith.constant 0 : i32
    return %arg0, %c0_i32 : i32, i32
  }
  func.func @transform_1(%arg0: i32) -> (i32, i32) {
    %c0_i32 = arith.constant 0 : i32
    %c0_i32_0 = arith.constant 0 : i32
    %c0_i32_1 = arith.constant 0 : i32
    return %c0_i32, %c0_i32_0 : i32, i32
  }
  func.func @transform_2(%arg0: i32) -> (i32, i32) {
    %c0_i32 = arith.constant 0 : i32
    %c0_i32_0 = arith.constant 0 : i32
    return %arg0, %c0_i32 : i32, i32
  }
}

</mosaic_0001>

<llo_original>
// kernel: tpu_custom_call.1
$region0: #{tpu_custom_call.1}
  #allocation0 [shape = 'u32[]', space=smem, size = 0x4, offset = 0x4, fixed_abs, tag = 'smem constant byte address 0x4 - core index']
  #allocation1 [shape = 'u32[144,128]{1,0:T(1,128)}', space=vmem, size = 0x12000, scoped, tag = 'internal scratch']
  %s0 = inlined_call_operand.hbm [shape: f32[8,16], index: 0, kind: input, shape index: {}]
  %s1 = inlined_call_operand.hbm [shape: f32[16,128], index: 1, kind: input, shape index: {}]
  %s2 = inlined_call_operand.hbm [shape: f32[8,128], index: 2, kind: output, shape index: {}]
  %s3 = sld [smem:[#allocation0]]
  $region26: #{tpu_custom_call.1} parent=0
    _
  %s5 = ssub.s32 1, %s3
  %s6 = scalar_select 0, %s5, %s3
  $region1: #{tpu_custom_call.1} parent=0
    #allocation2 [shape = 'u8[4096]{0}', space=vmem, size = 0x1000, scoped, tag = 'input window, operand 0, single buffered']
    #allocation3 [shape = 's32[1]{0}', space=sflag, size = 0x4, scoped, tag = 'scoped memory for tpu_custom_call.1']
    #allocation4 [shape = 's32[1]{0}', space=sflag, size = 0x4, scoped, tag = 'scoped memory for tpu_custom_call.1']
    #allocation5 [shape = 'u8[8192]{0}', space=vmem, size = 0x2000, scoped, tag = 'input window, operand 1, single buffered']
    #allocation6 [shape = 's32[1]{0}', space=sflag, size = 0x4, scoped, tag = 'scoped memory for tpu_custom_call.1']
    #allocation7 [shape = 'u8[4096]{0}', space=vmem, size = 0x1000, scoped, tag = 'output window, operand 0, single buffered']
    %7 = vsyncpa [#allocation3], 0
    %8 = vsyncpa [#allocation6], 0
    %9 = vsyncpa [#allocation4], 0
    // Predicated region
    $region2: #{tpu_custom_call.1} parent=1 // pred_check
      _
    $region3: #{tpu_custom_call.1} parent=1 // pred_check_branch
      %11 = sbr.rel (0) target = $region5
    $region4: #{tpu_custom_call.1} parent=1 // pred_region
      %s13 = ssub.s32 128, 128
      %14 = vsyncadd [#allocation3], %s13
      %s16 = sshll.u32 [#allocation2], 4
      %s17 = int_to_ptr.vmem [resolvable:$true] %s16
      %19 = dma.hbm_to_vmem [thread:$0]  %s0, 128, %s17, [#allocation3]
    $region5: #{tpu_custom_call.1} parent=1 // pred_fallthru
      _
    // Predicated region
    $region6: #{tpu_custom_call.1} parent=1 // pred_check
      _
    $region7: #{tpu_custom_call.1} parent=1 // pred_check_branch
      %21 = sbr.rel (0) target = $region9
    $region8: #{tpu_custom_call.1} parent=1 // pred_region
      %s23 = ssub.s32 256, 256
      %24 = vsyncadd [#allocation6], %s23
      %s25 = sshll.u32 [#allocation5], 4
      %s26 = int_to_ptr.vmem [resolvable:$true] %s25
      %31 = dma.hbm_to_vmem [thread:$0]  %s1, 256, %s26, [#allocation6], 128, 128, 8
    $region9: #{tpu_custom_call.1} parent=1 // pred_fallthru
      _
    // Predicated region
    $region10: #{tpu_custom_call.1} parent=1 // pred_check
      _
    $region11: #{tpu_custom_call.1} parent=1 // pred_check_branch
      %33 = sbr.rel (0) target = $region13
    $region12: #{tpu_custom_call.1} parent=1 // pred_region
      %34 = dma.done [#allocation3], 128
    $region13: #{tpu_custom_call.1} parent=1 // pred_fallthru
      _
    // Predicated region
    $region14: #{tpu_custom_call.1} parent=1 // pred_check
      _
    $region15: #{tpu_custom_call.1} parent=1 // pred_check_branch
      %36 = sbr.rel (0) target = $region17
    $region16: #{tpu_custom_call.1} parent=1 // pred_region
      %37 = dma.done [#allocation6], 256
    $region17: #{tpu_custom_call.1} parent=1 // pred_fallthru
      _
    %v38 = vld [vmem:[#allocation2] sm:$0xff]
    %v39 = vld [vmem:[#allocation5] sm:$0xff]
    %v40 = vld [vmem:[#allocation5 + $0x8] sm:$0xff]
    %vm41 = vcmask 130048
    %v43 = vsel %vm41, %v38, 0
    %45 = vmatprep.subr.mxu0 0.0
    %46 = vmatpush1.msra.mxu0 %v39
    %47 = vmatprep.subr.mxu0 0.0
    %48 = vmatpush1.msra.mxu0 %v40
    %49 = vmatprep.subr.mxu0 0.0
    %50 = vmatpush1.msra.mxu0 0.0
    %51 = vmatprep.subr.mxu0 0.0
    %52 = vmatpush1.msra.mxu0 0.0
    %53 = vmatprep.subr.mxu0 0.0
    %54 = vmatpush1.msra.mxu0 0.0
    %55 = vmatprep.subr.mxu0 0.0
    %56 = vmatpush1.msra.mxu0 0.0
    %57 = vmatprep.subr.mxu0 0.0
    %58 = vmatpush1.msra.mxu0 0.0
    %59 = vmatprep.subr.mxu0 0.0
    %60 = vmatpush1.msra.mxu0 0.0
    %61 = vmatprep.subr.mxu0 0.0
    %62 = vmatpush1.msra.mxu0 0.0
    %63 = vmatprep.subr.mxu0 0.0
    %64 = vmatpush1.msra.mxu0 0.0
    %65 = vmatprep.subr.mxu0 0.0
    %66 = vmatpush1.msra.mxu0 0.0
    %67 = vmatprep.subr.mxu0 0.0
    %68 = vmatpush1.msra.mxu0 0.0
    %69 = vmatprep.subr.mxu0 0.0
    %70 = vmatpush1.msra.mxu0 0.0
    %71 = vmatprep.subr.mxu0 0.0
    %72 = vmatpush1.msra.mxu0 0.0
    %73 = vmatprep.subr.mxu0 0.0
    %74 = vmatpush1.msra.mxu0 0.0
    %75 = vmatprep.subr.mxu0 0.0
    %76 = vmatpush1.msra.mxu0 0.0
    %77 = vmatprep.subr.mxu0 0.0
    %78 = vmatpush1.msra.mxu0 0.0
    %79 = vmatprep.subr.mxu0 0.0
    %80 = vmatpush1.msra.mxu0 0.0
    %81 = vmatprep.subr.mxu0 0.0
    %82 = vmatpush1.msra.mxu0 0.0
    %83 = vmatprep.subr.mxu0 0.0
    %84 = vmatpush1.msra.mxu0 0.0
    %85 = vmatprep.subr.mxu0 0.0
    %86 = vmatpush1.msra.mxu0 0.0
    %87 = vmatprep.subr.mxu0 0.0
    %88 = vmatpush1.msra.mxu0 0.0
    %89 = vmatprep.subr.mxu0 0.0
    %90 = vmatpush1.msra.mxu0 0.0
    %91 = vmatprep.subr.mxu0 0.0
    %92 = vmatpush1.msra.mxu0 0.0
    %93 = vmatprep.subr.mxu0 0.0
    %94 = vmatpush1.msra.mxu0 0.0
    %95 = vmatprep.subr.mxu0 0.0
    %96 = vmatpush1.msra.mxu0 0.0
    %97 = vmatprep.subr.mxu0 0.0
    %98 = vmatpush1.msra.mxu0 0.0
    %99 = vmatprep.subr.mxu0 0.0
    %100 = vmatpush1.msra.mxu0 0.0
    %101 = vmatprep.subr.mxu0 0.0
    %102 = vmatpush1.msra.mxu0 0.0
    %103 = vmatprep.subr.mxu0 0.0
    %104 = vmatpush1.msra.mxu0 0.0
    %105 = vmatprep.subr.mxu0 0.0
    %106 = vmatpush1.msra.mxu0 0.0
    %107 = vmatprep.subr.mxu0 0.0
    %108 = vmatpush1.msra.mxu0 0.0
    %109 = vmatprep.mubr.f32.mxu0 0.0
    %110 = vmatmul.mubr.f32.gmra.mrb[0].mxu0 %v43
    %v111 = vpop.f32.mrb[0].mxu0
    %v112 = vadd.f32 0.0, %v111
    %v113 = vpop.f32.mrb[0].mxu0
    %114 = vdwg.mxu0
    %v115 = vmul.f32 %v38, %v38
    %v117 = vsel %vm41, %v115, 0
    %119 = vmatprep.subr.mxu0 0.0
    %120 = vmatpush1.msra.mxu0 %v39
    %121 = vmatprep.subr.mxu0 0.0
    %122 = vmatpush1.msra.mxu0 %v40
    %123 = vmatprep.subr.mxu0 0.0
    %124 = vmatpush1.msra.mxu0 0.0
    %125 = vmatprep.subr.mxu0 0.0
    %126 = vmatpush1.msra.mxu0 0.0
    %127 = vmatprep.subr.mxu0 0.0
    %128 = vmatpush1.msra.mxu0 0.0
    %129 = vmatprep.subr.mxu0 0.0
    %130 = vmatpush1.msra.mxu0 0.0
    %131 = vmatprep.subr.mxu0 0.0
    %132 = vmatpush1.msra.mxu0 0.0
    %133 = vmatprep.subr.mxu0 0.0
    %134 = vmatpush1.msra.mxu0 0.0
    %135 = vmatprep.subr.mxu0 0.0
    %136 = vmatpush1.msra.mxu0 0.0
    %137 = vmatprep.subr.mxu0 0.0
    %138 = vmatpush1.msra.mxu0 0.0
    %139 = vmatprep.subr.mxu0 0.0
    %140 = vmatpush1.msra.mxu0 0.0
    %141 = vmatprep.subr.mxu0 0.0
    %142 = vmatpush1.msra.mxu0 0.0
    %143 = vmatprep.subr.mxu0 0.0
    %144 = vmatpush1.msra.mxu0 0.0
    %145 = vmatprep.subr.mxu0 0.0
    %146 = vmatpush1.msra.mxu0 0.0
    %147 = vmatprep.subr.mxu0 0.0
    %148 = vmatpush1.msra.mxu0 0.0
    %149 = vmatprep.subr.mxu0 0.0
    %150 = vmatpush1.msra.mxu0 0.0
    %151 = vmatprep.subr.mxu0 0.0
    %152 = vmatpush1.msra.mxu0 0.0
    %153 = vmatprep.subr.mxu0 0.0
    %154 = vmatpush1.msra.mxu0 0.0
    %155 = vmatprep.subr.mxu0 0.0
    %156 = vmatpush1.msra.mxu0 0.0
    %157 = vmatprep.subr.mxu0 0.0
    %158 = vmatpush1.msra.mxu0 0.0
    %159 = vmatprep.subr.mxu0 0.0
    %160 = vmatpush1.msra.mxu0 0.0
    %161 = vmatprep.subr.mxu0 0.0
    %162 = vmatpush1.msra.mxu0 0.0
    %163 = vmatprep.subr.mxu0 0.0
    %164 = vmatpush1.msra.mxu0 0.0
    %165 = vmatprep.subr.mxu0 0.0
    %166 = vmatpush1.msra.mxu0 0.0
    %167 = vmatprep.subr.mxu0 0.0
    %168 = vmatpush1.msra.mxu0 0.0
    %169 = vmatprep.subr.mxu0 0.0
    %170 = vmatpush1.msra.mxu0 0.0
    %171 = vmatprep.subr.mxu0 0.0
    %172 = vmatpush1.msra.mxu0 0.0
    %173 = vmatprep.subr.mxu0 0.0
    %174 = vmatpush1.msra.mxu0 0.0
    %175 = vmatprep.subr.mxu0 0.0
    %176 = vmatpush1.msra.mxu0 0.0
    %177 = vmatprep.subr.mxu0 0.0
    %178 = vmatpush1.msra.mxu0 0.0
    %179 = vmatprep.subr.mxu0 0.0
    %180 = vmatpush1.msra.mxu0 0.0
    %181 = vmatprep.subr.mxu0 0.0
    %182 = vmatpush1.msra.mxu0 0.0
    %183 = vmatprep.mubr.f32.mxu0 0.0
    %184 = vmatmul.mubr.f32.gmra.mrb[0].mxu0 %v117
    %v185 = vpop.f32.mrb[0].mxu0
    %v186 = vadd.f32 0.0, %v185
    %v187 = vpop.f32.mrb[0].mxu0
    %188 = vdwg.mxu0
    %v189 = vmul.f32 %v112, %v112
    %v190 = vmul.f32 %v189, 0.25
    %v191 = vsub.f32 %v186, %v190
    %v192 = vmul.f32 %v191, 0.33333334
    %v193 = vmax.f32 %v192, 1e-06
    %v194 = vmin.f32 %v193, 1000000.0
    %v195 = vlog2.pop %v194
    %v196 = vmul.f32 %v195, 0.6931472
    %197 = vst [vmem:[#allocation7] sm:$0xff] %v196
    // Predicated region
    $region18: #{tpu_custom_call.1} parent=1 // pred_check
      _
    $region19: #{tpu_custom_call.1} parent=1 // pred_check_branch
      %199 = sbr.rel (0) target = $region21
    $region20: #{tpu_custom_call.1} parent=1 // pred_region
      %s201 = ssub.s32 128, 128
      %202 = vsyncadd [#allocation4], %s201
      %s204 = sshll.u32 [#allocation7], 4
      %s205 = int_to_ptr.vmem [resolvable:$true] %s204
      %207 = dma.vmem_to_hbm [thread:$0]  %s205, 128, %s2, [#allocation4]
    $region21: #{tpu_custom_call.1} parent=1 // pred_fallthru
      _
    // Predicated region
    $region22: #{tpu_custom_call.1} parent=1 // pred_check
      _
    $region23: #{tpu_custom_call.1} parent=1 // pred_check_branch
      %209 = sbr.rel (0) target = $region25
    $region24: #{tpu_custom_call.1} parent=1 // pred_region
      %210 = dma.done [#allocation4], 128
    $region25: #{tpu_custom_call.1} parent=1 // pred_fallthru
      _
    %211 = vsyncpa [#allocation3], 1
    %212 = vsyncpa [#allocation6], 1
    %213 = vsyncpa [#allocation4], 1

</llo_original>
